<compile_context>
chip_gen: v7x
topology: tpu7x:2x2x1
jax: 0.10.0
libtpu: 0.0.40
codegen_flags: <defaults>
</compile_context>

<pallas_src>
import jax
import jax.numpy as jnp
from jax.experimental import pallas as pl
from jax.experimental.pallas import tpu as pltpu

_MAX_TILE = 2048  # rows per batch tile (f32 out + bf16 ins ~ <1 MiB double-buffered)


def qnet_kernel(b_ref, l_ref, a_ref,
                w1_ref, b1_ref, w2_ref, b2_ref, w3_ref, b3_ref, o_ref):
    # Fused concat: build the [bt, 72] fc1 activation in-register (lane shifts on
    # the XLU), then a single MXU dot against the full [72, 32] fc1 weight.
    x = jnp.concatenate([b_ref[...], l_ref[...], a_ref[...]], axis=-1)
    h1 = jnp.dot(x, w1_ref[...], preferred_element_type=jnp.float32) + b1_ref[...]
    h1 = jnp.maximum(h1, 0.0).astype(w2_ref.dtype)          # bf16 for next MXU op
    h2 = jnp.dot(h1, w2_ref[...], preferred_element_type=jnp.float32) + b2_ref[...]
    h2 = jnp.maximum(h2, 0.0).astype(w3_ref.dtype)
    q = jnp.dot(h2, w3_ref[...], preferred_element_type=jnp.float32) + b3_ref[...]
    o_ref[...] = q.astype(o_ref.dtype)


def _batch_tile(B: int) -> int:
    """Pick the batch tile.

    Big tiles amortize per-grid-step overhead (~0.35us); cap at ceil(B/2)
    (rounded up to 16 sublanes for bf16) so the grid keeps >= 2 steps when the
    batch is large enough -> both v7x TensorCores stay busy.  Hard cap 2048.
    """
    if B <= 16:
        return B                            # single full-array tile (latency path)
    half = -(-B // 2)                       # cdiv(B, 2)
    half = ((half + 15) // 16) * 16         # multiple of 16 sublanes (bf16 packing)
    return max(16, min(_MAX_TILE, min(half, B)))


@jax.jit
def qnetwork_forward(belief, latent, neighbor_actions, params):
    """Mirrors QNetwork.forward (concat fused into the kernel, bf16 compute,
    f32 accumulation and f32 output)."""
    # torch: if belief.dim() == 3: belief = belief.squeeze(0)   (same for latent)
    if belief.ndim == 3:
        belief = jnp.squeeze(belief, axis=0)
    if latent.ndim == 3:
        latent = jnp.squeeze(latent, axis=0)

    w1, b1, w2, b2, w3, b3 = params
    cdt = w1.dtype                                   # compute dtype (bf16)
    belief = belief.astype(cdt)
    latent = latent.astype(cdt)
    neighbor_actions = neighbor_actions.astype(cdt)

    B = belief.shape[0]
    action_dim = w3.shape[1]

    bt = _batch_tile(B)
    grid = (pl.cdiv(B, bt),)

    # Activations / output: tiled along batch.
    batch_spec = lambda d, dt=None: pl.BlockSpec(
        (bt, d), lambda i: (i, 0), memory_space=pltpu.MemorySpace.VMEM)
    # Weights / biases: full block, constant index_map -> VMEM-resident across
    # all grid steps (no re-DMA per batch tile).
    const_spec = lambda a: pl.BlockSpec(
        a.shape, lambda i: (0,) * a.ndim, memory_space=pltpu.MemorySpace.VMEM)

    out = pl.pallas_call(
        qnet_kernel,
        out_shape=jax.ShapeDtypeStruct((B, action_dim), jnp.float32),
        grid=grid,
        in_specs=[batch_spec(belief.shape[1]),
                  batch_spec(latent.shape[1]),
                  batch_spec(neighbor_actions.shape[1]),
                  const_spec(w1), const_spec(b1),
                  const_spec(w2), const_spec(b2),
                  const_spec(w3), const_spec(b3)],
        out_specs=batch_spec(action_dim),
        compiler_params=pltpu.CompilerParams(
            dimension_semantics=("parallel",)),
    )(belief, latent, neighbor_actions, w1, b1, w2, b2, w3, b3)
    return out


def xavier_normal(key, fan_in, fan_out, dtype=jnp.bfloat16):
    # matches nn.init.xavier_normal_ (gain=1): std = sqrt(2 / (fan_in + fan_out));
    # stored transposed as [fan_in, fan_out] for x @ W, kept in bf16.
    std = (2.0 / (fan_in + fan_out)) ** 0.5
    return (std * jax.random.normal(key, (fan_in, fan_out), dtype=jnp.float32)
            ).astype(dtype)


def init_params(key, belief_dim, latent_dim, action_dim, hidden_dim, num_agents):
    input_dim = belief_dim + latent_dim + action_dim * num_agents
    k1, k2, k3, kb1, kb2, kb3 = jax.random.split(key, 6)
    w1 = xavier_normal(k1, input_dim, hidden_dim)
    w2 = xavier_normal(k2, hidden_dim, hidden_dim)
    w3 = xavier_normal(k3, hidden_dim, action_dim)
    # nn.Linear default bias init: U(-1/sqrt(fan_in), 1/sqrt(fan_in)); biases kept
    # f32 and 2-D [1, out] (added after the f32-accumulated dot).
    b1 = jax.random.uniform(kb1, (1, hidden_dim), jnp.float32,
                            -1.0 / input_dim ** 0.5, 1.0 / input_dim ** 0.5)
    b2 = jax.random.uniform(kb2, (1, hidden_dim), jnp.float32,
                            -1.0 / hidden_dim ** 0.5, 1.0 / hidden_dim ** 0.5)
    b3 = jax.random.uniform(kb3, (1, action_dim), jnp.float32,
                            -1.0 / hidden_dim ** 0.5, 1.0 / hidden_dim ** 0.5)
    return (w1, b1, w2, b2, w3, b3)


def reference_forward(belief, latent, neighbor_actions, params):
    # Pure-JAX reference mirroring the kernel's numerics (bf16 ops, f32 acc).
    if belief.ndim == 3:
        belief = jnp.squeeze(belief, axis=0)
    if latent.ndim == 3:
        latent = jnp.squeeze(latent, axis=0)
    w1, b1, w2, b2, w3, b3 = params
    cdt = w1.dtype
    x = jnp.concatenate([belief.astype(cdt), latent.astype(cdt),
                         neighbor_actions.astype(cdt)], axis=1)
    h = jnp.maximum(jnp.dot(x, w1, preferred_element_type=jnp.float32) + b1, 0.0)
    h = jnp.maximum(jnp.dot(h.astype(cdt), w2,
                            preferred_element_type=jnp.float32) + b2, 0.0)
    return jnp.dot(h.astype(cdt), w3, preferred_element_type=jnp.float32) + b3


if __name__ == "__main__":
    belief_dim, latent_dim, action_dim, hidden_dim, num_agents = 16, 16, 4, 32, 10
    batch = 8

    key = jax.random.PRNGKey(0)
    kp, kb, kl, ka = jax.random.split(key, 4)
    params = init_params(kp, belief_dim, latent_dim, action_dim, hidden_dim,
                         num_agents)

    # --- small batch, exercising the 3-D-input squeeze(0) path (single grid tile)
    belief = jax.random.normal(kb, (1, batch, belief_dim), dtype=jnp.float32)
    latent = jax.random.normal(kl, (1, batch, latent_dim), dtype=jnp.float32)
    neighbor_actions = jax.random.normal(
        ka, (batch, action_dim * num_agents), dtype=jnp.float32)

    q = qnetwork_forward(belief, latent, neighbor_actions, params)
    q = jax.block_until_ready(q)
    q_ref = reference_forward(belief, latent, neighbor_actions, params)
    assert q.shape == (batch, action_dim)
    assert jnp.allclose(q, q_ref, atol=2e-2, rtol=2e-2)

    # --- larger batch: 2 parallel grid tiles (512 + partial 488), bf16 inputs
    big_batch = 1000
    kb2_, kl2_, ka2_ = jax.random.split(jax.random.PRNGKey(1), 3)
    belief_b = jax.random.normal(kb2_, (big_batch, belief_dim),
                                 dtype=jnp.bfloat16)
    latent_b = jax.random.normal(kl2_, (big_batch, latent_dim),
                                 dtype=jnp.bfloat16)
    actions_b = jax.random.normal(ka2_, (big_batch, action_dim * num_agents),
                                  dtype=jnp.bfloat16)

    qb = qnetwork_forward(belief_b, latent_b, actions_b, params)
    qb = jax.block_until_ready(qb)
    qb_ref = reference_forward(belief_b, latent_b, actions_b, params)
    assert qb.shape == (big_batch, action_dim)
    assert jnp.allclose(qb, qb_ref, atol=2e-2, rtol=2e-2)

    print("KERNEL_OK")
</pallas_src>

<mosaic_0001>
module attributes {stable_mosaic.version = 11 : i64} {
  func.func @qnet_kernel(%arg0: i32, %arg1: memref<8x16xbf16, #tpu.memory_space<vmem>>, %arg2: memref<8x16xbf16, #tpu.memory_space<vmem>>, %arg3: memref<8x40xbf16, #tpu.memory_space<vmem>>, %arg4: memref<72x32xbf16, #tpu.memory_space<vmem>>, %arg5: memref<1x32xf32, #tpu.memory_space<vmem>>, %arg6: memref<32x32xbf16, #tpu.memory_space<vmem>>, %arg7: memref<1x32xf32, #tpu.memory_space<vmem>>, %arg8: memref<32x4xbf16, #tpu.memory_space<vmem>>, %arg9: memref<1x4xf32, #tpu.memory_space<vmem>>, %arg10: memref<8x4xf32, #tpu.memory_space<vmem>>) attributes {dimension_semantics = [#tpu.dimension_semantics<parallel>], iteration_bounds = array<i64: 1>, scalar_prefetch = 0 : i64, scratch_operands = 0 : i64, tpu.core_type = #tpu.core_type<tc>, window_params = [{transform_indices = @transform_0, window_bounds = array<i64: 8, 16>}, {transform_indices = @transform_1, window_bounds = array<i64: 8, 16>}, {transform_indices = @transform_2, window_bounds = array<i64: 8, 40>}, {pipeline_mode = #tpu.pipeline_mode<synchronous>, transform_indices = @transform_3, window_bounds = array<i64: 72, 32>}, {pipeline_mode = #tpu.pipeline_mode<synchronous>, transform_indices = @transform_4, window_bounds = array<i64: 1, 32>}, {pipeline_mode = #tpu.pipeline_mode<synchronous>, transform_indices = @transform_5, window_bounds = array<i64: 32, 32>}, {pipeline_mode = #tpu.pipeline_mode<synchronous>, transform_indices = @transform_6, window_bounds = array<i64: 1, 32>}, {pipeline_mode = #tpu.pipeline_mode<synchronous>, transform_indices = @transform_7, window_bounds = array<i64: 32, 4>}, {pipeline_mode = #tpu.pipeline_mode<synchronous>, transform_indices = @transform_8, window_bounds = array<i64: 1, 4>}, {transform_indices = @transform_9, window_bounds = array<i64: 8, 4>}]} {
    %c0 = arith.constant 0 : index
    %c0_0 = arith.constant 0 : index
    %0 = vector.load %arg1[%c0, %c0_0] : memref<8x16xbf16, #tpu.memory_space<vmem>>, vector<8x16xbf16>
    %c0_1 = arith.constant 0 : index
    %c0_2 = arith.constant 0 : index
    %1 = vector.load %arg2[%c0_1, %c0_2] : memref<8x16xbf16, #tpu.memory_space<vmem>>, vector<8x16xbf16>
    %c0_3 = arith.constant 0 : index
    %c0_4 = arith.constant 0 : index
    %2 = vector.load %arg3[%c0_3, %c0_4] : memref<8x40xbf16, #tpu.memory_space<vmem>>, vector<8x40xbf16>
    %3 = tpu.concatenate %0, %1, %2 in 1 : vector<8x16xbf16>, vector<8x16xbf16>, vector<8x40xbf16> -> vector<8x72xbf16>
    %c0_5 = arith.constant 0 : index
    %c0_6 = arith.constant 0 : index
    %4 = vector.load %arg4[%c0_5, %c0_6] : memref<72x32xbf16, #tpu.memory_space<vmem>>, vector<72x32xbf16>
    %cst = arith.constant dense<0.000000e+00> : vector<8x32xf32>
    %5 = tpu.matmul %3, %4, %cst {dimension_numbers = #tpu.dot_dimension_numbers<[1], [0], [0], [1], [0, 0, 1, 1], [], []>} : vector<8x72xbf16>, vector<72x32xbf16>, vector<8x32xf32> -> vector<8x32xf32>
    %c0_7 = arith.constant 0 : index
    %c0_8 = arith.constant 0 : index
    %6 = vector.load %arg5[%c0_7, %c0_8] : memref<1x32xf32, #tpu.memory_space<vmem>>, vector<1x32xf32>
    %7 = vector.broadcast %6 : vector<1x32xf32> to vector<8x32xf32>
    %8 = arith.addf %5, %7 : vector<8x32xf32>
    %cst_9 = arith.constant 0.000000e+00 : f32
    %9 = vector.broadcast %cst_9 : f32 to vector<8x32xf32>
    %10 = arith.maximumf %8, %9 : vector<8x32xf32>
    %11 = arith.truncf %10 : vector<8x32xf32> to vector<8x32xbf16>
    %c0_10 = arith.constant 0 : index
    %c0_11 = arith.constant 0 : index
    %12 = vector.load %arg6[%c0_10, %c0_11] : memref<32x32xbf16, #tpu.memory_space<vmem>>, vector<32x32xbf16>
    %cst_12 = arith.constant dense<0.000000e+00> : vector<8x32xf32>
    %13 = tpu.matmul %11, %12, %cst_12 {dimension_numbers = #tpu.dot_dimension_numbers<[1], [0], [0], [1], [0, 0, 1, 1], [], []>} : vector<8x32xbf16>, vector<32x32xbf16>, vector<8x32xf32> -> vector<8x32xf32>
    %c0_13 = arith.constant 0 : index
    %c0_14 = arith.constant 0 : index
    %14 = vector.load %arg7[%c0_13, %c0_14] : memref<1x32xf32, #tpu.memory_space<vmem>>, vector<1x32xf32>
    %15 = vector.broadcast %14 : vector<1x32xf32> to vector<8x32xf32>
    %16 = arith.addf %13, %15 : vector<8x32xf32>
    %cst_15 = arith.constant 0.000000e+00 : f32
    %17 = vector.broadcast %cst_15 : f32 to vector<8x32xf32>
    %18 = arith.maximumf %16, %17 : vector<8x32xf32>
    %19 = arith.truncf %18 : vector<8x32xf32> to vector<8x32xbf16>
    %c0_16 = arith.constant 0 : index
    %c0_17 = arith.constant 0 : index
    %20 = vector.load %arg8[%c0_16, %c0_17] : memref<32x4xbf16, #tpu.memory_space<vmem>>, vector<32x4xbf16>
    %cst_18 = arith.constant dense<0.000000e+00> : vector<8x4xf32>
    %21 = tpu.matmul %19, %20, %cst_18 {dimension_numbers = #tpu.dot_dimension_numbers<[1], [0], [0], [1], [0, 0, 1, 1], [], []>} : vector<8x32xbf16>, vector<32x4xbf16>, vector<8x4xf32> -> vector<8x4xf32>
    %c0_19 = arith.constant 0 : index
    %c0_20 = arith.constant 0 : index
    %22 = vector.load %arg9[%c0_19, %c0_20] : memref<1x4xf32, #tpu.memory_space<vmem>>, vector<1x4xf32>
    %23 = vector.broadcast %22 : vector<1x4xf32> to vector<8x4xf32>
    %24 = arith.addf %21, %23 : vector<8x4xf32>
    %c0_21 = arith.constant 0 : index
    %c0_22 = arith.constant 0 : index
    %25 = vector.load %arg10[%c0_21, %c0_22] : memref<8x4xf32, #tpu.memory_space<vmem>>, vector<8x4xf32>
    tpu.vector_store %arg10[%c0_21, %c0_22], %24 {strides = array<i32>} : memref<8x4xf32, #tpu.memory_space<vmem>>, vector<8x4xf32>,
    return
  }
  func.func @transform_0(%arg0: i32) -> (i32, i32) {
    %c0_i32 = arith.constant 0 : i32
    %c0_i32_0 = arith.constant 0 : i32
    return %arg0, %c0_i32 : i32, i32
  }
  func.func @transform_1(%arg0: i32) -> (i32, i32) {
    %c0_i32 = arith.constant 0 : i32
    %c0_i32_0 = arith.constant 0 : i32
    return %arg0, %c0_i32 : i32, i32
  }
  func.func @transform_2(%arg0: i32) -> (i32, i32) {
    %c0_i32 = arith.constant 0 : i32
    %c0_i32_0 = arith.constant 0 : i32
    return %arg0, %c0_i32 : i32, i32
  }
  func.func @transform_3(%arg0: i32) -> (i32, i32) {
    %c0_i32 = arith.constant 0 : i32
    %c0_i32_0 = arith.constant 0 : i32
    %c0_i32_1 = arith.constant 0 : i32
    return %c0_i32, %c0_i32_0 : i32, i32
  }
  func.func @transform_4(%arg0: i32) -> (i32, i32) {
    %c0_i32 = arith.constant 0 : i32
    %c0_i32_0 = arith.constant 0 : i32
    %c0_i32_1 = arith.constant 0 : i32
    return %c0_i32, %c0_i32_0 : i32, i32
  }
  func.func @transform_5(%arg0: i32) -> (i32, i32) {
    %c0_i32 = arith.constant 0 : i32
    %c0_i32_0 = arith.constant 0 : i32
    %c0_i32_1 = arith.constant 0 : i32
    return %c0_i32, %c0_i32_0 : i32, i32
  }
  func.func @transform_6(%arg0: i32) -> (i32, i32) {
    %c0_i32 = arith.constant 0 : i32
    %c0_i32_0 = arith.constant 0 : i32
    %c0_i32_1 = arith.constant 0 : i32
    return %c0_i32, %c0_i32_0 : i32, i32
  }
  func.func @transform_7(%arg0: i32) -> (i32, i32) {
    %c0_i32 = arith.constant 0 : i32
    %c0_i32_0 = arith.constant 0 : i32
    %c0_i32_1 = arith.constant 0 : i32
    return %c0_i32, %c0_i32_0 : i32, i32
  }
  func.func @transform_8(%arg0: i32) -> (i32, i32) {
    %c0_i32 = arith.constant 0 : i32
    %c0_i32_0 = arith.constant 0 : i32
    %c0_i32_1 = arith.constant 0 : i32
    return %c0_i32, %c0_i32_0 : i32, i32
  }
  func.func @transform_9(%arg0: i32) -> (i32, i32) {
    %c0_i32 = arith.constant 0 : i32
    %c0_i32_0 = arith.constant 0 : i32
    return %arg0, %c0_i32 : i32, i32
  }
}

</mosaic_0001>

<llo_original>
// kernel: qnetwork_forward.1
$region0: #{qnetwork_forward.1}
  #allocation0 [shape = 'u32[]', space=smem, size = 0x4, offset = 0x4, fixed_abs, tag = 'smem constant byte address 0x4 - core index']
  #allocation1 [shape = 'u32[144,128]{1,0:T(1,128)}', space=vmem, size = 0x12000, scoped, tag = 'internal scratch']
  %s0 = inlined_call_operand.vmem [shape: bf16[8,16], index: 0, kind: input, shape index: {}]
  %s1 = inlined_call_operand.vmem [shape: bf16[8,16], index: 1, kind: input, shape index: {}]
  %s2 = inlined_call_operand.vmem [shape: bf16[8,40], index: 2, kind: input, shape index: {}]
  %s3 = inlined_call_operand.vmem [shape: bf16[72,32], index: 3, kind: input, shape index: {}]
  %s4 = inlined_call_operand.vmem [shape: f32[1,32], index: 4, kind: input, shape index: {}]
  %s5 = inlined_call_operand.vmem [shape: bf16[32,32], index: 5, kind: input, shape index: {}]
  %s6 = inlined_call_operand.vmem [shape: f32[1,32], index: 6, kind: input, shape index: {}]
  %s7 = inlined_call_operand.vmem [shape: bf16[32,4], index: 7, kind: input, shape index: {}]
  %s8 = inlined_call_operand.vmem [shape: f32[1,4], index: 8, kind: input, shape index: {}]
  %s9 = inlined_call_operand.vmem [shape: f32[8,4], index: 9, kind: output, shape index: {}]
  %s10 = sld [smem:[#allocation0]]
  $region46: #{qnetwork_forward.1} parent=0
    _
  %s12 = ssub.s32 1, %s10
  %s13 = scalar_select 0, %s12, %s10
  // Predicated region
  $region2: #{qnetwork_forward.1} parent=0 // pred_check
    _
  $region3: #{qnetwork_forward.1} parent=0 // pred_check_branch
    %15 = sbr.rel (0) target = $region5
  $region4: #{qnetwork_forward.1} parent=0 // pred_region
    _
  $region5: #{qnetwork_forward.1} parent=0 // pred_fallthru
    _
  // Predicated region
  $region6: #{qnetwork_forward.1} parent=0 // pred_check
    _
  $region7: #{qnetwork_forward.1} parent=0 // pred_check_branch
    %17 = sbr.rel (0) target = $region9
  $region8: #{qnetwork_forward.1} parent=0 // pred_region
    _
  $region9: #{qnetwork_forward.1} parent=0 // pred_fallthru
    _
  // Predicated region
  $region10: #{qnetwork_forward.1} parent=0 // pred_check
    _
  $region11: #{qnetwork_forward.1} parent=0 // pred_check_branch
    %19 = sbr.rel (0) target = $region13
  $region12: #{qnetwork_forward.1} parent=0 // pred_region
    _
  $region13: #{qnetwork_forward.1} parent=0 // pred_fallthru
    _
  // Predicated region
  $region14: #{qnetwork_forward.1} parent=0 // pred_check
    _
  $region15: #{qnetwork_forward.1} parent=0 // pred_check_branch
    %21 = sbr.rel (0) target = $region17
  $region16: #{qnetwork_forward.1} parent=0 // pred_region
    _
  $region17: #{qnetwork_forward.1} parent=0 // pred_fallthru
    _
  // Predicated region
  $region18: #{qnetwork_forward.1} parent=0 // pred_check
    _
  $region19: #{qnetwork_forward.1} parent=0 // pred_check_branch
    %23 = sbr.rel (0) target = $region21
  $region20: #{qnetwork_forward.1} parent=0 // pred_region
    _
  $region21: #{qnetwork_forward.1} parent=0 // pred_fallthru
    _
  // Predicated region
  $region22: #{qnetwork_forward.1} parent=0 // pred_check
    _
  $region23: #{qnetwork_forward.1} parent=0 // pred_check_branch
    %25 = sbr.rel (0) target = $region25
  $region24: #{qnetwork_forward.1} parent=0 // pred_region
    _
  $region25: #{qnetwork_forward.1} parent=0 // pred_fallthru
    _
  // Predicated region
  $region26: #{qnetwork_forward.1} parent=0 // pred_check
    _
  $region27: #{qnetwork_forward.1} parent=0 // pred_check_branch
    %27 = sbr.rel (0) target = $region29
  $region28: #{qnetwork_forward.1} parent=0 // pred_region
    _
  $region29: #{qnetwork_forward.1} parent=0 // pred_fallthru
    _
  // Predicated region
  $region30: #{qnetwork_forward.1} parent=0 // pred_check
    _
  $region31: #{qnetwork_forward.1} parent=0 // pred_check_branch
    %29 = sbr.rel (0) target = $region33
  $region32: #{qnetwork_forward.1} parent=0 // pred_region
    _
  $region33: #{qnetwork_forward.1} parent=0 // pred_fallthru
    _
  // Predicated region
  $region34: #{qnetwork_forward.1} parent=0 // pred_check
    _
  $region35: #{qnetwork_forward.1} parent=0 // pred_check_branch
    %31 = sbr.rel (0) target = $region37
  $region36: #{qnetwork_forward.1} parent=0 // pred_region
    _
  $region37: #{qnetwork_forward.1} parent=0 // pred_fallthru
    _
  %v33 = vld [vmem:[%s0] sm:$0xf]
  %v34 = vld [vmem:[%s1] sm:$0xf]
  %v35 = vld [vmem:[%s2] sm:$0xf]
  %v37 = vunpack.c.l.b16 %v34
  %v38 = vpack.c.b16 %v37, %v37
  %39 = vrot.lane.b32.xlu0 %v38, 16
  %v40 = vpop.permute.xlu0 %39
  %v42 = vunpack.c.l.b16 %v35
  %v43 = vpack.c.b16 %v42, %v42
  %44 = vrot.lane.b32.xlu0 %v43, 32
  %v45 = vpop.permute.xlu0 %44
  %vm46 = vcmask 130048
  %v49 = vsel %vm46, %v33, %v40
  %vm50 = vcmask 261120
  %v52 = vsel %vm50, %v49, %v45
  %v53 = vld [vmem:[%s3] sm:$0xf]
  %v54 = vld [vmem:[%s3 + $0x4] sm:$0xf]
  %v55 = vld [vmem:[%s3 + $0x8] sm:$0xf]
  %v56 = vld [vmem:[%s3 + $0xc] sm:$0xf]
  %v57 = vld [vmem:[%s3 + $0x10] sm:$0xf]
  %v58 = vld [vmem:[%s3 + $0x14] sm:$0xf]
  %v59 = vld [vmem:[%s3 + $0x18] sm:$0xf]
  %v60 = vld [vmem:[%s3 + $0x1c] sm:$0xf]
  %v61 = vld [vmem:[%s3 + $0x20] sm:$0xf]
  %v62 = vld [vmem:[%s4] sm:$0x1]
  %v64 = vlaneseq
  %v65 = vshrl.u32 %v64, 7
  %v66 = vsub.s32 0, %v65
  %v67 = vrot.slane %v62, %v66
  %v78 = vunpack.c.l.b16 %v53
  %v79 = vunpack.c.l.b16 %v54
  %v80 = vunpack.c.l.b16 %v55
  %v81 = vunpack.c.l.b16 %v56
  %v82 = vunpack.c.l.b16 %v57
  %v83 = vunpack.c.l.b16 %v58
  %v84 = vunpack.c.l.b16 %v59
  %v85 = vunpack.c.l.b16 %v60
  %v86 = vunpack.c.l.b16 %v61
  %v87 = vpack.c.b16 %v79, %v78
  %v88 = vpack.c.b16 %v81, %v80
  %v89 = vpack.c.b16 %v83, %v82
  %v90 = vpack.c.b16 %v85, %v84
  %v91 = vpack.c.b16 %v86, %v86
  %vm96 = vcmask 588800
  %v97 = vsel %vm96, %v52, 0
  %vm99 = vcmask 1043456
  %v101 = vsel %vm99, %v91, 0
  %103 = vmatprep.subr.bf16.mxu0 0
  %104 = vmatpush1.bf16.msra.mxu0 %v87
  %105 = vmatprep.subr.bf16.mxu0 0
  %106 = vmatpush1.bf16.msra.mxu0 %v88
  %107 = vmatprep.subr.bf16.mxu0 0
  %108 = vmatpush1.bf16.msra.mxu0 %v89
  %109 = vmatprep.subr.bf16.mxu0 0
  %110 = vmatpush1.bf16.msra.mxu0 %v90
  %111 = vmatprep.subr.bf16.mxu0 0
  %112 = vmatpush1.bf16.msra.mxu0 %v101
  %113 = vmatprep.subr.bf16.mxu0 0
  %114 = vmatpush1.bf16.msra.mxu0 0
  %115 = vmatprep.subr.bf16.mxu0 0
  %116 = vmatpush1.bf16.msra.mxu0 0
  %117 = vmatprep.subr.bf16.mxu0 0
  %118 = vmatpush1.bf16.msra.mxu0 0
  %119 = vmatprep.subr.bf16.mxu0 0
  %120 = vmatpush1.bf16.msra.mxu0 0
  %121 = vmatprep.subr.bf16.mxu0 0
  %122 = vmatpush1.bf16.msra.mxu0 0
  %123 = vmatprep.subr.bf16.mxu0 0
  %124 = vmatpush1.bf16.msra.mxu0 0
  %125 = vmatprep.subr.bf16.mxu0 0
  %126 = vmatpush1.bf16.msra.mxu0 0
  %127 = vmatprep.subr.bf16.mxu0 0
  %128 = vmatpush1.bf16.msra.mxu0 0
  %129 = vmatprep.subr.bf16.mxu0 0
  %130 = vmatpush1.bf16.msra.mxu0 0
  %131 = vmatprep.subr.bf16.mxu0 0
  %132 = vmatpush1.bf16.msra.mxu0 0
  %133 = vmatprep.subr.bf16.mxu0 0
  %134 = vmatpush1.bf16.msra.mxu0 0
  %135 = vmatprep.mubr.bf16.mxu0 0
  %136 = vmatmul.mubr.bf16.gmra.mrb[0].mxu0 %v97
  %v137 = vpop.f32.mrb[0].mxu0
  %v138 = vadd.f32 %v67, %v137
  %v139 = vpop.f32.mrb[0].mxu0
  %v140 = vpop.f32.mrb[0].mxu0
  %v141 = vpop.f32.mrb[0].mxu0
  %142 = vdwg.mxu0
  %v143 = vmax.f32 %v138, 0.0
  %v144 = vpack.c.bf16 %v143, %v143
  %v145 = vld [vmem:[%s5] sm:$0xf]
  %v146 = vld [vmem:[%s5 + $0x4] sm:$0xf]
  %v147 = vld [vmem:[%s5 + $0x8] sm:$0xf]
  %v148 = vld [vmem:[%s5 + $0xc] sm:$0xf]
  %v149 = vld [vmem:[%s6] sm:$0x1]
  %v151 = vlaneseq
  %v152 = vshrl.u32 %v151, 7
  %v153 = vsub.s32 0, %v152
  %v154 = vrot.slane %v149, %v153
  %v160 = vunpack.c.l.b16 %v145
  %v161 = vunpack.c.l.b16 %v146
  %v162 = vunpack.c.l.b16 %v147
  %v163 = vunpack.c.l.b16 %v148
  %v164 = vpack.c.b16 %v161, %v160
  %v165 = vpack.c.b16 %v163, %v162
  %v169 = vsel %vm50, %v144, 0
  %171 = vmatprep.subr.bf16.mxu0 0
  %172 = vmatpush1.bf16.msra.mxu0 %v164
  %173 = vmatprep.subr.bf16.mxu0 0
  %174 = vmatpush1.bf16.msra.mxu0 %v165
  %175 = vmatprep.subr.bf16.mxu0 0
  %176 = vmatpush1.bf16.msra.mxu0 0
  %177 = vmatprep.subr.bf16.mxu0 0
  %178 = vmatpush1.bf16.msra.mxu0 0
  %179 = vmatprep.subr.bf16.mxu0 0
  %180 = vmatpush1.bf16.msra.mxu0 0
  %181 = vmatprep.subr.bf16.mxu0 0
  %182 = vmatpush1.bf16.msra.mxu0 0
  %183 = vmatprep.subr.bf16.mxu0 0
  %184 = vmatpush1.bf16.msra.mxu0 0
  %185 = vmatprep.subr.bf16.mxu0 0
  %186 = vmatpush1.bf16.msra.mxu0 0
  %187 = vmatprep.subr.bf16.mxu0 0
  %188 = vmatpush1.bf16.msra.mxu0 0
  %189 = vmatprep.subr.bf16.mxu0 0
  %190 = vmatpush1.bf16.msra.mxu0 0
  %191 = vmatprep.subr.bf16.mxu0 0
  %192 = vmatpush1.bf16.msra.mxu0 0
  %193 = vmatprep.subr.bf16.mxu0 0
  %194 = vmatpush1.bf16.msra.mxu0 0
  %195 = vmatprep.subr.bf16.mxu0 0
  %196 = vmatpush1.bf16.msra.mxu0 0
  %197 = vmatprep.subr.bf16.mxu0 0
  %198 = vmatpush1.bf16.msra.mxu0 0
  %199 = vmatprep.subr.bf16.mxu0 0
  %200 = vmatpush1.bf16.msra.mxu0 0
  %201 = vmatprep.subr.bf16.mxu0 0
  %202 = vmatpush1.bf16.msra.mxu0 0
  %203 = vmatprep.mubr.bf16.mxu0 0
  %204 = vmatmul.mubr.bf16.gmra.mrb[0].mxu0 %v169
  %v205 = vpop.f32.mrb[0].mxu0
  %v206 = vadd.f32 %v154, %v205
  %v207 = vpop.f32.mrb[0].mxu0
  %v208 = vpop.f32.mrb[0].mxu0
  %v209 = vpop.f32.mrb[0].mxu0
  %210 = vdwg.mxu0
  %v211 = vmax.f32 %v206, 0.0
  %v212 = vpack.c.bf16 %v211, %v211
  %v213 = vld [vmem:[%s7] sm:$0xf]
  %v214 = vld [vmem:[%s7 + $0x4] sm:$0xf]
  %v215 = vld [vmem:[%s7 + $0x8] sm:$0xf]
  %v216 = vld [vmem:[%s7 + $0xc] sm:$0xf]
  %v217 = vld [vmem:[%s8] sm:$0x1]
  %v219 = vlaneseq
  %v220 = vshrl.u32 %v219, 7
  %v221 = vsub.s32 0, %v220
  %v222 = vrot.slane %v217, %v221
  %v228 = vunpack.c.l.b16 %v213
  %v229 = vunpack.c.l.b16 %v214
  %v230 = vunpack.c.l.b16 %v215
  %v231 = vunpack.c.l.b16 %v216
  %v232 = vpack.c.b16 %v229, %v228
  %v233 = vpack.c.b16 %v231, %v230
  %v237 = vsel %vm50, %v212, 0
  %239 = vmatprep.subr.bf16.mxu0 0
  %240 = vmatpush1.bf16.msra.mxu0 %v232
  %241 = vmatprep.subr.bf16.mxu0 0
  %242 = vmatpush1.bf16.msra.mxu0 %v233
  %243 = vmatprep.subr.bf16.mxu0 0
  %244 = vmatpush1.bf16.msra.mxu0 0
  %245 = vmatprep.subr.bf16.mxu0 0
  %246 = vmatpush1.bf16.msra.mxu0 0
  %247 = vmatprep.subr.bf16.mxu0 0
  %248 = vmatpush1.bf16.msra.mxu0 0
  %249 = vmatprep.subr.bf16.mxu0 0
  %250 = vmatpush1.bf16.msra.mxu0 0
  %251 = vmatprep.subr.bf16.mxu0 0
  %252 = vmatpush1.bf16.msra.mxu0 0
  %253 = vmatprep.subr.bf16.mxu0 0
  %254 = vmatpush1.bf16.msra.mxu0 0
  %255 = vmatprep.subr.bf16.mxu0 0
  %256 = vmatpush1.bf16.msra.mxu0 0
  %257 = vmatprep.subr.bf16.mxu0 0
  %258 = vmatpush1.bf16.msra.mxu0 0
  %259 = vmatprep.subr.bf16.mxu0 0
  %260 = vmatpush1.bf16.msra.mxu0 0
  %261 = vmatprep.subr.bf16.mxu0 0
  %262 = vmatpush1.bf16.msra.mxu0 0
  %263 = vmatprep.subr.bf16.mxu0 0
  %264 = vmatpush1.bf16.msra.mxu0 0
  %265 = vmatprep.subr.bf16.mxu0 0
  %266 = vmatpush1.bf16.msra.mxu0 0
  %267 = vmatprep.subr.bf16.mxu0 0
  %268 = vmatpush1.bf16.msra.mxu0 0
  %269 = vmatprep.subr.bf16.mxu0 0
  %270 = vmatpush1.bf16.msra.mxu0 0
  %271 = vmatprep.mubr.bf16.mxu0 0
  %272 = vmatmul.mubr.bf16.gmra.mrb[0].mxu0 %v237
  %v273 = vpop.f32.mrb[0].mxu0
  %v274 = vadd.f32 %v222, %v273
  %v275 = vpop.f32.mrb[0].mxu0
  %v276 = vpop.f32.mrb[0].mxu0
  %v277 = vpop.f32.mrb[0].mxu0
  %278 = vdwg.mxu0
  %vm279 = vcmask 31744
  %280 = vst.msk [vmem:[%s9] sm:$0xff] %vm279, %v274
  // Predicated region
  $region38: #{qnetwork_forward.1} parent=0 // pred_check
    _
  $region39: #{qnetwork_forward.1} parent=0 // pred_check_branch
    %282 = sbr.rel (0) target = $region41
  $region40: #{qnetwork_forward.1} parent=0 // pred_region
    _
  $region41: #{qnetwork_forward.1} parent=0 // pred_fallthru
    _
  // Predicated region
  $region42: #{qnetwork_forward.1} parent=0 // pred_check
    _
  $region43: #{qnetwork_forward.1} parent=0 // pred_check_branch
    %284 = sbr.rel (0) target = $region45
  $region44: #{qnetwork_forward.1} parent=0 // pred_region
    _
  $region45: #{qnetwork_forward.1} parent=0 // pred_fallthru
    _

</llo_original>
